<compile_context>
chip_gen: v7x
topology: tpu7x:2x2x1
jax: 0.10.0
libtpu: 0.0.40
codegen_flags: <defaults>
</compile_context>

<pallas_src>
import jax
import jax.numpy as jnp
import numpy as np
from jax import lax
from jax.experimental import pallas as pl
from jax.experimental.pallas import tpu as pltpu


# --------------------------------------------------------------------------
# Pallas kernel: one batch per grid step, single MXU GEMM + bias epilogue.
# --------------------------------------------------------------------------
def _hetconv_gemm_kernel(w_ref, b_ref, x_ref, o_ref):
    # w_ref: VMEM (Cout, Cin*9)   fused 3x3 weights (f32)
    # b_ref: VMEM (Cout, 1)       fused bias (f32)
    # x_ref: VMEM (1, Cin*9, H*W) im2col activations for this batch (f32)
    # o_ref: VMEM (1, Cout, H*W)  lane-dense output slab for this batch
    acc = jnp.dot(w_ref[...], x_ref[0], preferred_element_type=jnp.float32)
    o_ref[0] = (acc + b_ref[...]).astype(o_ref.dtype)


def hetconv2d_pallas(x, w_full, b_full):
    """x: (N, Cin, H, W) f32; w_full: (Cout, Cin, 3, 3); b_full: (Cout,)."""
    N, Cin, H, W = x.shape
    Cout = w_full.shape[0]
    HW = H * W
    K = Cin * 9

    # ---- layout plumbing only (no FLOPs): pad + im2col -------------------
    # x_col[n, ci*9 + ky*3 + kx, h*W + w] = x_pad[n, ci, h + ky, w + kx]
    x_pad = jnp.pad(x, ((0, 0), (0, 0), (1, 1), (1, 1)))
    slabs = [x_pad[:, :, ky:ky + H, kx:kx + W]
             for ky in range(3) for kx in range(3)]          # 9 x (N,Cin,H,W)
    x_col = jnp.stack(slabs, axis=2).reshape(N, K, HW).astype(jnp.float32)

    w_mat = w_full.reshape(Cout, K).astype(jnp.float32)       # (ci,ky,kx) order
    b_col = b_full.reshape(Cout, 1).astype(jnp.float32)

    flops = 2 * N * Cout * K * HW
    bytes_accessed = 4 * (N * K * HW + Cout * K + Cout + N * Cout * HW)

    out_flat = pl.pallas_call(
        _hetconv_gemm_kernel,
        out_shape=jax.ShapeDtypeStruct((N, Cout, HW), x.dtype),
        grid=(N,),
        in_specs=[
            pl.BlockSpec((Cout, K), lambda n: (0, 0)),        # weights (VMEM)
            pl.BlockSpec((Cout, 1), lambda n: (0, 0)),        # bias    (VMEM)
            pl.BlockSpec((1, K, HW), lambda n: (n, 0, 0)),    # im2col input
        ],
        out_specs=pl.BlockSpec((1, Cout, HW), lambda n: (n, 0, 0)),
        compiler_params=pltpu.CompilerParams(
            dimension_semantics=("parallel",),
            vmem_limit_bytes=32 * 1024 * 1024),
        cost_estimate=pl.CostEstimate(
            flops=flops, transcendentals=0, bytes_accessed=bytes_accessed),
    )(w_mat, b_col, x_col)

    return out_flat.reshape(N, Cout, H, W)


# --------------------------------------------------------------------------
# Parameter construction (deterministic, synthetic) + fusion glue
# --------------------------------------------------------------------------
def init_params(key, in_feats, out_feats, p):
    c3 = in_feats // p                # channels seen by each 3x3 conv
    c1 = in_feats - c3                # channels seen by each 1x1 conv
    k0, k1, k2, k3 = jax.random.split(key, 4)
    w3 = jax.random.normal(k0, (out_feats, 1, c3, 3, 3), jnp.float32) * 0.1
    b3 = jax.random.normal(k1, (out_feats, 1), jnp.float32) * 0.1
    w1 = jax.random.normal(k2, (out_feats, 1, c1, 1, 1), jnp.float32) * 0.1
    b1 = jax.random.normal(k3, (out_feats, 1), jnp.float32) * 0.1
    return w3, b3, w1, b1


def fuse_params(w3, b3, w1, b1, in_feats, out_feats, p):
    """Build an equivalent dense 3x3 weight replicating the channel routing."""
    w3 = np.asarray(w3); w1 = np.asarray(w1)
    W_full = np.zeros((out_feats, in_feats, 3, 3), np.float32)
    for i in range(out_feats):
        idx3 = [j for j in range(in_feats) if (j - i) % p == 0]
        idx1 = [j for j in range(in_feats) if (j - i) % p != 0]
        for k, j in enumerate(idx3):
            W_full[i, j] = w3[i, 0, k]
        for k, j in enumerate(idx1):
            W_full[i, j, 1, 1] = w1[i, 0, k, 0, 0]
    b_full = np.asarray(b3[:, 0] + b1[:, 0]).astype(np.float32)
    return jnp.asarray(W_full), jnp.asarray(b_full)


# --------------------------------------------------------------------------
# Pure-JAX reference mirroring the PyTorch forward loop exactly
# --------------------------------------------------------------------------
def hetconv2d_ref(x, w3, b3, w1, b1, p):
    N, Cin, H, W = x.shape
    out_feats = w3.shape[0]
    outs = []
    for i in range(out_feats):
        idx3 = jnp.array([j for j in range(Cin) if (j - i) % p == 0])
        idx1 = jnp.array([j for j in range(Cin) if (j - i) % p != 0])
        x3 = x[:, idx3, :, :]
        x1 = x[:, idx1, :, :]
        o3 = lax.conv_general_dilated(
            x3, w3[i], (1, 1), ((1, 1), (1, 1)),
            dimension_numbers=("NCHW", "OIHW", "NCHW")) + b3[i].reshape(1, 1, 1, 1)
        o1 = lax.conv_general_dilated(
            x1, w1[i], (1, 1), ((0, 0), (0, 0)),
            dimension_numbers=("NCHW", "OIHW", "NCHW")) + b1[i].reshape(1, 1, 1, 1)
        outs.append(o3 + o1)
    return jnp.concatenate(outs, axis=1)


if __name__ == "__main__":
    in_feats, out_feats, p = 4, 8, 4
    N, H, W = 2, 16, 16

    key = jax.random.PRNGKey(0)
    kx, kp = jax.random.split(key)
    x = jax.random.normal(kx, (N, in_feats, H, W), jnp.float32)

    w3, b3, w1, b1 = init_params(kp, in_feats, out_feats, p)
    W_full, b_full = fuse_params(w3, b3, w1, b1, in_feats, out_feats, p)

    hetconv_jit = jax.jit(hetconv2d_pallas)
    out = hetconv_jit(x, W_full, b_full)
    out = jax.block_until_ready(out)

    ref = hetconv2d_ref(x, w3, b3, w1, b1, p)
    assert out.shape == (N, out_feats, H, W), out.shape
    if not jnp.allclose(out, ref, atol=1e-4, rtol=1e-4):
        raise AssertionError("Pallas HetConv2d_v2 does not match reference")
    print("KERNEL_OK")
</pallas_src>

<mosaic_0001>
module attributes {stable_mosaic.version = 11 : i64} {
  func.func @_hetconv_gemm_kernel(%arg0: i32, %arg1: memref<8x36xf32, #tpu.memory_space<vmem>>, %arg2: memref<8x1xf32, #tpu.memory_space<vmem>>, %arg3: memref<1x36x256xf32, #tpu.memory_space<vmem>>, %arg4: memref<1x8x256xf32, #tpu.memory_space<vmem>>) attributes {dimension_semantics = [#tpu.dimension_semantics<parallel>], iteration_bounds = array<i64: 2>, scalar_prefetch = 0 : i64, scratch_operands = 0 : i64, tpu.core_type = #tpu.core_type<tc>, window_params = [{pipeline_mode = #tpu.pipeline_mode<synchronous>, transform_indices = @transform_0, window_bounds = array<i64: 8, 36>}, {pipeline_mode = #tpu.pipeline_mode<synchronous>, transform_indices = @transform_1, window_bounds = array<i64: 8, 1>}, {transform_indices = @transform_2, window_bounds = array<i64: 1, 36, 256>}, {transform_indices = @transform_3, window_bounds = array<i64: 1, 8, 256>}]} {
    %c0 = arith.constant 0 : index
    %c0_0 = arith.constant 0 : index
    %0 = vector.load %arg1[%c0, %c0_0] : memref<8x36xf32, #tpu.memory_space<vmem>>, vector<8x36xf32>
    %c0_1 = arith.constant 0 : index
    %c0_2 = arith.constant 0 : index
    %c0_3 = arith.constant 0 : index
    %1 = vector.load %arg3[%c0_1, %c0_2, %c0_3] : memref<1x36x256xf32, #tpu.memory_space<vmem>>, vector<1x36x256xf32>
    %2 = vector.shape_cast %1 : vector<1x36x256xf32> to vector<36x256xf32>
    %cst = arith.constant dense<0.000000e+00> : vector<8x256xf32>
    %3 = tpu.matmul %0, %2, %cst {dimension_numbers = #tpu.dot_dimension_numbers<[1], [0], [0], [1], [0, 0, 1, 1], [], []>} : vector<8x36xf32>, vector<36x256xf32>, vector<8x256xf32> -> vector<8x256xf32>
    %c0_4 = arith.constant 0 : index
    %c0_5 = arith.constant 0 : index
    %4 = vector.load %arg2[%c0_4, %c0_5] : memref<8x1xf32, #tpu.memory_space<vmem>>, vector<8x1xf32>
    %5 = vector.broadcast %4 : vector<8x1xf32> to vector<8x256xf32>
    %6 = arith.addf %3, %5 : vector<8x256xf32>
    %c0_6 = arith.constant 0 : index
    %c0_7 = arith.constant 0 : index
    %c0_8 = arith.constant 0 : index
    %7 = vector.load %arg4[%c0_6, %c0_7, %c0_8] : memref<1x8x256xf32, #tpu.memory_space<vmem>>, vector<1x8x256xf32>
    %8 = vector.shape_cast %7 : vector<1x8x256xf32> to vector<8x256xf32>
    %9 = vector.shape_cast %6 : vector<8x256xf32> to vector<1x8x256xf32>
    tpu.vector_store %arg4[%c0_6, %c0_7, %c0_8], %9 {strides = array<i32>} : memref<1x8x256xf32, #tpu.memory_space<vmem>>, vector<1x8x256xf32>,
    return
  }
  func.func @transform_0(%arg0: i32) -> (i32, i32) {
    %c0_i32 = arith.constant 0 : i32
    %c0_i32_0 = arith.constant 0 : i32
    %c0_i32_1 = arith.constant 0 : i32
    return %c0_i32, %c0_i32_0 : i32, i32
  }
  func.func @transform_1(%arg0: i32) -> (i32, i32) {
    %c0_i32 = arith.constant 0 : i32
    %c0_i32_0 = arith.constant 0 : i32
    %c0_i32_1 = arith.constant 0 : i32
    return %c0_i32, %c0_i32_0 : i32, i32
  }
  func.func @transform_2(%arg0: i32) -> (i32, i32, i32) {
    %c0_i32 = arith.constant 0 : i32
    %c0_i32_0 = arith.constant 0 : i32
    %c0_i32_1 = arith.constant 0 : i32
    return %arg0, %c0_i32, %c0_i32_0 : i32, i32, i32
  }
  func.func @transform_3(%arg0: i32) -> (i32, i32, i32) {
    %c0_i32 = arith.constant 0 : i32
    %c0_i32_0 = arith.constant 0 : i32
    %c0_i32_1 = arith.constant 0 : i32
    return %arg0, %c0_i32, %c0_i32_0 : i32, i32, i32
  }
}

</mosaic_0001>

<llo_original>
// kernel: hetconv2d_pallas.1
$region0: #{hetconv2d_pallas.1}
  #allocation0 [shape = 'u32[]', space=smem, size = 0x4, offset = 0x4, fixed_abs, tag = 'smem constant byte address 0x4 - core index']
  #allocation1 [shape = 'u32[144,128]{1,0:T(1,128)}', space=vmem, size = 0x12000, scoped, tag = 'internal scratch']
  %s0 = inlined_call_operand.vmem [shape: f32[8,36], index: 0, kind: input, shape index: {}]
  %s1 = inlined_call_operand.vmem [shape: f32[8,1], index: 1, kind: input, shape index: {}]
  %s2 = inlined_call_operand.vmem [shape: f32[2,36,256], index: 2, kind: input, shape index: {}]
  %s3 = inlined_call_operand.vmem [shape: f32[2,8,256], index: 3, kind: output, shape index: {}]
  %s4 = sld [smem:[#allocation0]]
  $region45: #{hetconv2d_pallas.1} parent=0
    _
  %s6 = ssub.s32 1, %s4
  %s7 = scalar_select 0, %s6, %s4
  loop: start=0, step=1, limit=4
  $region2: #{hetconv2d_pallas.1} parent=0 // loop_pre_header
    _
  $region3: #{hetconv2d_pallas.1} parent=0 // loop_header
    %s9 = sphi 0, %s13
    %p10 = scmp.ge.s32.totalorder %s9, 4
    %s17 = sphi 0, %s17
    %s19 = sphi 0, %s17
    %s20 = sphi 0, %s19
    %s34 = sphi 0, %s20
    %s38 = sphi 0, %s38
    %s40 = sphi 0, %s38
    %s41 = sphi 0, %s40
    %s55 = sphi 0, %s41
    %s61 = sphi 0, %s63
    %s64 = sphi 0, %s61
    %s65 = sphi 0, %s64
    %s81 = sphi 0, %s65
    %s87 = sphi 0, %s89
    %s90 = sphi 0, %s87
    %s91 = sphi 0, %s90
    %s107 = sphi 0, %s91
  $region4: #{hetconv2d_pallas.1} parent=0 // loop_header_branch
    %12 = sbr.rel (%p10) target = $region8
  $region5: #{hetconv2d_pallas.1} parent=0 // loop_body
    %s14 = ssub.s32 %s9, 1
    %s15 = ssub.s32 %s9, 2
    %s16 = sadd.s32 %s9, 1
    %s18 = sadd.s32 %s17, 1
    %p21 = scmp.eq.s32.totalorder %s9, 1
    %p22 = scmp.ne.s32.totalorder %s17, %s19
    %p23 = scmp.eq.s32.totalorder %s9, 0
    %p24 = por %p22, %p23
    %p25 = scmp.ne.s32.totalorder %s17, %s19
    %p26 = scmp.eq.s32.totalorder %s14, 1
    %p27 = por %p25, %p26
    %p28 = scmp.ne.s32.totalorder %s19, %s20
    %p29 = scmp.eq.s32.totalorder %s14, 0
    %p30 = por %p28, %p29
    %p31 = scmp.ne.s32.totalorder %s19, %s20
    %p32 = scmp.eq.s32.totalorder %s15, 1
    %p33 = por %p31, %p32
    %p35 = scmp.ne.s32.totalorder %s20, %s34
    %p36 = scmp.eq.s32.totalorder %s15, 0
    %p37 = por %p35, %p36
    %s39 = sadd.s32 %s38, 1
    %p42 = scmp.eq.s32.totalorder %s9, 1
    %p43 = scmp.ne.s32.totalorder %s38, %s40
    %p44 = scmp.eq.s32.totalorder %s9, 0
    %p45 = por %p43, %p44
    %p46 = scmp.ne.s32.totalorder %s38, %s40
    %p47 = scmp.eq.s32.totalorder %s14, 1
    %p48 = por %p46, %p47
    %p49 = scmp.ne.s32.totalorder %s40, %s41
    %p50 = scmp.eq.s32.totalorder %s14, 0
    %p51 = por %p49, %p50
    %p52 = scmp.ne.s32.totalorder %s40, %s41
    %p53 = scmp.eq.s32.totalorder %s15, 1
    %p54 = por %p52, %p53
    %p56 = scmp.ne.s32.totalorder %s41, %s55
    %p57 = scmp.eq.s32.totalorder %s15, 0
    %p58 = por %p56, %p57
    %s59 = ssub.s32 %s9, %s16
    %p60 = scmp.eq.s32.totalorder %s59, 0
    %s62 = sadd.s32 %s61, 1
    %s63 = scalar_select %p60, %s61, %s62
    %p66 = pneg %p60
    %p67 = scmp.eq.s32.totalorder %s9, 1
    %p68 = por %p66, %p67
    %p69 = scmp.ne.s32.totalorder %s61, %s64
    %p70 = scmp.eq.s32.totalorder %s9, 0
    %p71 = por %p69, %p70
    %p72 = scmp.ne.s32.totalorder %s61, %s64
    %p73 = scmp.eq.s32.totalorder %s14, 1
    %p74 = por %p72, %p73
    %p75 = scmp.ne.s32.totalorder %s64, %s65
    %p76 = scmp.eq.s32.totalorder %s14, 0
    %p77 = por %p75, %p76
    %p78 = scmp.ne.s32.totalorder %s64, %s65
    %p79 = scmp.eq.s32.totalorder %s15, 1
    %p80 = por %p78, %p79
    %p82 = scmp.ne.s32.totalorder %s65, %s81
    %p83 = scmp.eq.s32.totalorder %s15, 0
    %p84 = por %p82, %p83
    %s85 = ssub.s32 %s9, %s16
    %p86 = scmp.eq.s32.totalorder %s85, 0
    %s88 = sadd.s32 %s87, 1
    %s89 = scalar_select %p86, %s87, %s88
    %p92 = pneg %p86
    %p93 = scmp.eq.s32.totalorder %s9, 1
    %p94 = por %p92, %p93
    %p95 = scmp.ne.s32.totalorder %s87, %s90
    %p96 = scmp.eq.s32.totalorder %s9, 0
    %p97 = por %p95, %p96
    %p98 = scmp.ne.s32.totalorder %s87, %s90
    %p99 = scmp.eq.s32.totalorder %s14, 1
    %p100 = por %p98, %p99
    %p101 = scmp.ne.s32.totalorder %s90, %s91
    %p102 = scmp.eq.s32.totalorder %s14, 0
    %p103 = por %p101, %p102
    %p104 = scmp.ne.s32.totalorder %s90, %s91
    %p105 = scmp.eq.s32.totalorder %s15, 1
    %p106 = por %p104, %p105
    %p108 = scmp.ne.s32.totalorder %s91, %s107
    %p109 = scmp.eq.s32.totalorder %s15, 0
    %p110 = por %p108, %p109
    %p111 = scmp.le.s32.totalorder 1, %s9
    %p112 = scmp.lt.s32.totalorder %s9, 3
    %p113 = pnand %p111, %p112
    %p114 = pneg %p113
    // Predicated region
    $region9: #{hetconv2d_pallas.1} parent=5 // pred_check
      _
    $region10: #{hetconv2d_pallas.1} parent=5 // pred_check_branch
      %116 = sbr.rel (%p113) target = $region12
    $region11: #{hetconv2d_pallas.1} parent=5 // pred_region
      %s117 = ssub.s32 %s9, 1
      // Predicated region
      $region13: #{hetconv2d_pallas.1} parent=11 // pred_check
        %p118 = pneg %p30
      $region14: #{hetconv2d_pallas.1} parent=11 // pred_check_branch
        %120 = sbr.rel (%p118) target = $region16
      $region15: #{hetconv2d_pallas.1} parent=11 // pred_region
        _
      $region16: #{hetconv2d_pallas.1} parent=11 // pred_fallthru
        _
      // Predicated region
      $region17: #{hetconv2d_pallas.1} parent=11 // pred_check
        %p121 = pneg %p51
      $region18: #{hetconv2d_pallas.1} parent=11 // pred_check_branch
        %123 = sbr.rel (%p121) target = $region20
      $region19: #{hetconv2d_pallas.1} parent=11 // pred_region
        _
      $region20: #{hetconv2d_pallas.1} parent=11 // pred_fallthru
        _
    $region12: #{hetconv2d_pallas.1} parent=5 // pred_fallthru
      _
    %p124 = scmp.lt.s32.totalorder %s9, 2
    // Predicated region
    $region21: #{hetconv2d_pallas.1} parent=5 // pred_check
      %p125 = pneg %p124
    $region22: #{hetconv2d_pallas.1} parent=5 // pred_check_branch
      %127 = sbr.rel (%p125) target = $region24
    $region23: #{hetconv2d_pallas.1} parent=5 // pred_region
      // Predicated region
      $region25: #{hetconv2d_pallas.1} parent=23 // pred_check
        %p128 = pneg %p71
      $region26: #{hetconv2d_pallas.1} parent=23 // pred_check_branch
        %130 = sbr.rel (%p128) target = $region28
      $region27: #{hetconv2d_pallas.1} parent=23 // pred_region
        %p131 = scmp.lt.s32.totalorder %s9, 1
        %s132 = scalar_select %p131, %s9, 1
        %s133 = smul.addr %s132, 10
        %s134 = smul.addr %s133, 8
        %s135 = scalar_lea.vmem %s2, %s134
      $region28: #{hetconv2d_pallas.1} parent=23 // pred_fallthru
        _
    $region24: #{hetconv2d_pallas.1} parent=5 // pred_fallthru
      _
    %p136 = scmp.le.s32.totalorder 1, %s9
    %p137 = scmp.lt.s32.totalorder %s9, 3
    %p138 = pnand %p136, %p137
    %p139 = pneg %p138
    // Predicated region
    $region29: #{hetconv2d_pallas.1} parent=5 // pred_check
      _
    $region30: #{hetconv2d_pallas.1} parent=5 // pred_check_branch
      %141 = sbr.rel (%p138) target = $region32
    $region31: #{hetconv2d_pallas.1} parent=5 // pred_region
      %s142 = ssub.s32 %s9, 1
      %p143 = pneg %p30
      %p144 = pneg %p27
      %p145 = pneg %p51
      %p146 = pneg %p48
      %p147 = scmp.lt.s32.totalorder %s14, 1
      %s148 = scalar_select %p147, %s14, 1
      %s149 = smul.addr %s148, 10
      %s150 = smul.addr %s149, 8
      %s151 = scalar_lea.vmem %s2, %s150
      %p152 = pneg %p77
      %p153 = pneg %p74
      %p154 = pneg %p103
      %p155 = pneg %p100
      %p156 = scmp.lt.s32.totalorder %s14, 1
      %s157 = scalar_select %p156, %s14, 1
      %s158 = smul.addr %s157, 2
      %s159 = smul.addr %s158, 8
      %s160 = scalar_lea.vmem %s3, %s159
      %p161 = scmp.lt.s32.totalorder %s14, 1
      %s162 = scalar_select %p161, %s14, 1
      %s163 = smul.addr %s162, 10
      %s164 = smul.addr %s163, 8
      %s165 = scalar_lea.vmem %s2, %s164
      %p166 = scmp.lt.s32.totalorder %s14, 1
      %s167 = scalar_select %p166, %s14, 1
      %s168 = smul.addr %s167, 2
      %s169 = smul.addr %s168, 8
      %s170 = scalar_lea.vmem %s3, %s169
      %v171 = vld [vmem:[%s0] sm:$0xff]
      %v172 = vld [vmem:[%s165] sm:$0xff]
      %v173 = vld [vmem:[%s165 + $0x8] sm:$0xff]
      %v174 = vld [vmem:[%s165 + $0x10] sm:$0xff]
      %v175 = vld [vmem:[%s165 + $0x18] sm:$0xff]
      %v176 = vld [vmem:[%s165 + $0x20] sm:$0xff]
      %v177 = vld [vmem:[%s165 + $0x28] sm:$0xff]
      %v178 = vld [vmem:[%s165 + $0x30] sm:$0xff]
      %v179 = vld [vmem:[%s165 + $0x38] sm:$0xff]
      %v180 = vld [vmem:[%s165 + $0x40] sm:$0xf]
      %v181 = vld [vmem:[%s165 + $0x48] sm:$0xf]
      %v182 = vld [vmem:[%s1] sm:$0xff]
      %184 = vset.pattern.permute.xlu0 0
      %185 = vperm.xlu0 %184, %v182
      %v186 = vpop.permute.xlu0 %185
      %vm188 = vcmask 293888
      %v190 = vsel %vm188, %v171, 0
      %vm192 = vcmask 1043456
      %v194 = vsel %vm192, %v180, 0
      %v197 = vsel %vm192, %v181, 0
      %199 = vmatprep.subr.mxu0 %v173
      %200 = vmatpush1.msra.mxu0 %v172
      %201 = vmatprep.subr.mxu0 %v175
      %202 = vmatpush1.msra.mxu0 %v174
      %203 = vmatprep.subr.mxu0 %v177
      %204 = vmatpush1.msra.mxu0 %v176
      %205 = vmatprep.subr.mxu0 %v179
      %206 = vmatpush1.msra.mxu0 %v178
      %207 = vmatprep.subr.mxu0 %v197
      %208 = vmatpush1.msra.mxu0 %v194
      %209 = vmatprep.subr.mxu0 0.0
      %210 = vmatpush1.msra.mxu0 0.0
      %211 = vmatprep.subr.mxu0 0.0
      %212 = vmatpush1.msra.mxu0 0.0
      %213 = vmatprep.subr.mxu0 0.0
      %214 = vmatpush1.msra.mxu0 0.0
      %215 = vmatprep.subr.mxu0 0.0
      %216 = vmatpush1.msra.mxu0 0.0
      %217 = vmatprep.subr.mxu0 0.0
      %218 = vmatpush1.msra.mxu0 0.0
      %219 = vmatprep.subr.mxu0 0.0
      %220 = vmatpush1.msra.mxu0 0.0
      %221 = vmatprep.subr.mxu0 0.0
      %222 = vmatpush1.msra.mxu0 0.0
      %223 = vmatprep.subr.mxu0 0.0
      %224 = vmatpush1.msra.mxu0 0.0
      %225 = vmatprep.subr.mxu0 0.0
      %226 = vmatpush1.msra.mxu0 0.0
      %227 = vmatprep.subr.mxu0 0.0
      %228 = vmatpush1.msra.mxu0 0.0
      %229 = vmatprep.subr.mxu0 0.0
      %230 = vmatpush1.msra.mxu0 0.0
      %231 = vmatprep.subr.mxu0 0.0
      %232 = vmatpush1.msra.mxu0 0.0
      %233 = vmatprep.subr.mxu0 0.0
      %234 = vmatpush1.msra.mxu0 0.0
      %235 = vmatprep.subr.mxu0 0.0
      %236 = vmatpush1.msra.mxu0 0.0
      %237 = vmatprep.subr.mxu0 0.0
      %238 = vmatpush1.msra.mxu0 0.0
      %239 = vmatprep.subr.mxu0 0.0
      %240 = vmatpush1.msra.mxu0 0.0
      %241 = vmatprep.subr.mxu0 0.0
      %242 = vmatpush1.msra.mxu0 0.0
      %243 = vmatprep.subr.mxu0 0.0
      %244 = vmatpush1.msra.mxu0 0.0
      %245 = vmatprep.subr.mxu0 0.0
      %246 = vmatpush1.msra.mxu0 0.0
      %247 = vmatprep.subr.mxu0 0.0
      %248 = vmatpush1.msra.mxu0 0.0
      %249 = vmatprep.subr.mxu0 0.0
      %250 = vmatpush1.msra.mxu0 0.0
      %251 = vmatprep.subr.mxu0 0.0
      %252 = vmatpush1.msra.mxu0 0.0
      %253 = vmatprep.subr.mxu0 0.0
      %254 = vmatpush1.msra.mxu0 0.0
      %255 = vmatprep.subr.mxu0 0.0
      %256 = vmatpush1.msra.mxu0 0.0
      %257 = vmatprep.subr.mxu0 0.0
      %258 = vmatpush1.msra.mxu0 0.0
      %259 = vmatprep.subr.mxu0 0.0
      %260 = vmatpush1.msra.mxu0 0.0
      %261 = vmatprep.subr.mxu0 0.0
      %262 = vmatpush1.msra.mxu0 0.0
      %263 = vmatprep.mubr.f32.mxu0 0.0
      %264 = vmatmul.mubr.f32.gmra.mrb[0].mxu0 %v190
      %v265 = vpop.f32.mrb[0].mxu0
      %v266 = vadd.f32 %v186, %v265
      %v267 = vpop.f32.mrb[0].mxu0
      %v268 = vadd.f32 %v186, %v267
      %269 = vdwg.mxu0
      %270 = vst [vmem:[%s170] sm:$0xff] %v266
      %271 = vst [vmem:[%s170 + $0x8] sm:$0xff] %v268
      %p272 = scmp.lt.s32.totalorder %s14, 1
      %s273 = scalar_select %p272, %s14, 1
      %s274 = smul.addr %s273, 2
      %s275 = smul.addr %s274, 8
      %s276 = scalar_lea.vmem %s3, %s275
      // Predicated region
      $region33: #{hetconv2d_pallas.1} parent=31 // pred_check
        %p277 = pneg %p100
      $region34: #{hetconv2d_pallas.1} parent=31 // pred_check_branch
        %279 = sbr.rel (%p277) target = $region36
      $region35: #{hetconv2d_pallas.1} parent=31 // pred_region
        _
      $region36: #{hetconv2d_pallas.1} parent=31 // pred_fallthru
        _
    $region32: #{hetconv2d_pallas.1} parent=5 // pred_fallthru
      _
    %p280 = scmp.le.s32.totalorder 2, %s9
    // Predicated region
    $region37: #{hetconv2d_pallas.1} parent=5 // pred_check
      %p281 = pneg %p280
    $region38: #{hetconv2d_pallas.1} parent=5 // pred_check_branch
      %283 = sbr.rel (%p281) target = $region40
    $region39: #{hetconv2d_pallas.1} parent=5 // pred_region
      %s284 = ssub.s32 %s9, 2
      // Predicated region
      $region41: #{hetconv2d_pallas.1} parent=39 // pred_check
        %p285 = pneg %p106
      $region42: #{hetconv2d_pallas.1} parent=39 // pred_check_branch
        %287 = sbr.rel (%p285) target = $region44
      $region43: #{hetconv2d_pallas.1} parent=39 // pred_region
        %p288 = scmp.lt.s32.totalorder %s15, 1
        %s289 = scalar_select %p288, %s15, 1
        %s290 = smul.addr %s289, 2
        %s291 = smul.addr %s290, 8
        %s292 = scalar_lea.vmem %s3, %s291
      $region44: #{hetconv2d_pallas.1} parent=39 // pred_fallthru
        _
    $region40: #{hetconv2d_pallas.1} parent=5 // pred_fallthru
      _
  $region6: #{hetconv2d_pallas.1} parent=0 // loop_footer
    %s13 = sadd.s32 1, %s9
  $region7: #{hetconv2d_pallas.1} parent=0 // loop_footer_branch
    %8 = sbr.rel target = $region3
  $region8: #{hetconv2d_pallas.1} parent=0 // loop_exit
    _

</llo_original>
